<compile_context>
chip_gen: v5e
topology: v5e:2x2
jax: 0.10.0
libtpu: 0.0.40
codegen_flags: <defaults>
</compile_context>

<pallas_src>
import functools

import jax
import jax.numpy as jnp
from jax.experimental import pallas as pl
from jax.experimental.pallas import tpu as pltpu

N_PAD = 128      # lane-dense width for the final projection (real out_dim = 3)
BN_EPS = 1e-5    # PyTorch BatchNorm1d default


def _discriminator1_kernel(x_ref, w1_ref, p_ref, w2b2_ref, o_ref, *, matmul_dtype):
    # Shapes: x (B, D), w1 (D, H),
    #         p (8, H)          rows: 0=b1, 1=gamma, 2=beta, rest zero (sublane pad),
    #         w2b2 (H+8, N_PAD) rows [:H]=w2 (lane-padded), row H=b2, rest zero,
    #         o (B, N_PAD).
    H = p_ref.shape[1]

    b1 = p_ref[0:1, :]                  # (1, H)
    gamma = p_ref[1:2, :]               # (1, H)
    beta = p_ref[2:3, :]                # (1, H)
    w2 = w2b2_ref[0:H, :]               # (H, N_PAD)
    b2 = w2b2_ref[H:H + 1, :]           # (1, N_PAD)

    # ---- dis1: Linear + ReLU. f32 MXU accumulation; operands in matmul_dtype. ----
    h = jnp.dot(x_ref[...].astype(matmul_dtype),
                w1_ref[...].astype(matmul_dtype),
                preferred_element_type=jnp.float32)
    h = jnp.maximum(h + b1, 0.0)                                 # (B, H) f32

    # ---- BatchNorm1d, training-mode semantics (batch mean, *biased* variance). ----
    # Fused single XLU reduce over [h | h*h] along the batch axis; all stats in f32.
    inv_b = 1.0 / h.shape[0]
    sums = jnp.sum(jnp.concatenate([h, h * h], axis=1),
                   axis=0, keepdims=True) * inv_b                # (1, 2H)
    mean = sums[:, :H]                                           # (1, H)
    mean_sq = sums[:, H:]                                        # (1, H)
    var = jnp.maximum(mean_sq - mean * mean, 0.0)                # biased variance
    scale = gamma * jax.lax.rsqrt(var + BN_EPS)                  # (1, H)
    shift = beta - mean * scale                                  # (1, H)

    # ---- dis2: Linear with BN folded in (shift added in f32 BEFORE any cast). ----
    #   bn(h) @ w2 + b2 == (h * scale + shift) @ w2 + b2
    hn = h * scale + shift                                       # (B, H) f32
    out = jnp.dot(hn.astype(matmul_dtype),
                  w2.astype(matmul_dtype),
                  preferred_element_type=jnp.float32) + b2       # (B, N_PAD)
    o_ref[...] = out.astype(o_ref.dtype)


def prepare_discriminator1_params(w1, b1, gamma, beta, w2, b2):
    """One-time parameter prep (do NOT call per forward).

    Packs the small per-feature vectors into one sublane-padded (8, H) slab and packs
    w2/b2 into one lane-padded (H+8, N_PAD) slab; padded rows/columns are zero so the
    padded output columns are exactly zero.  Linear weights are (in_features,
    out_features), i.e. transposed vs PyTorch's nn.Linear storage.
    """
    D, H = w1.shape
    n_out = w2.shape[1]
    assert n_out <= N_PAD

    small = jnp.zeros((8, H), jnp.float32)
    small = small.at[0].set(b1).at[1].set(gamma).at[2].set(beta)

    w2b2 = jnp.zeros((H + 8, N_PAD), jnp.float32)
    w2b2 = w2b2.at[:H, :n_out].set(w2).at[H, :n_out].set(b2)

    return (w1, small, w2b2)


@functools.partial(jax.jit, static_argnames=("n_out", "matmul_dtype"))
def discriminator1_apply(x, params, *, n_out=3, matmul_dtype=jnp.float32):
    """x: (B, input_dim); params from prepare_discriminator1_params. Returns (B, n_out)."""
    w1, small, w2b2 = params
    B = x.shape[0]

    vmem = pl.BlockSpec(memory_space=pltpu.MemorySpace.VMEM)
    out_padded = pl.pallas_call(
        functools.partial(_discriminator1_kernel, matmul_dtype=matmul_dtype),
        out_shape=jax.ShapeDtypeStruct((B, N_PAD), jnp.float32),
        in_specs=[vmem] * 4,
        out_specs=vmem,
    )(x, w1, small, w2b2)

    # Lane-dense slab inside the kernel; slice to the module's 3 logits outside.
    return out_padded[:, :n_out]


if __name__ == "__main__":
    # Small shapes consistent with the module's forward: x is (batch, input_dim).
    BATCH, INPUT_DIM, HIDDEN_DIM, OUT_DIM = 8, 32, 32, 3

    key = jax.random.PRNGKey(0)
    kx, kw1, kb1, kw2, kb2 = jax.random.split(key, 5)

    x = jax.random.normal(kx, (BATCH, INPUT_DIM), dtype=jnp.float32)

    # Deterministic parameter init (uniform, roughly matching nn.Linear scale).
    lim1 = 1.0 / (INPUT_DIM ** 0.5)
    w1 = jax.random.uniform(kw1, (INPUT_DIM, HIDDEN_DIM), jnp.float32, -lim1, lim1)
    b1 = jax.random.uniform(kb1, (HIDDEN_DIM,), jnp.float32, -lim1, lim1)

    # BatchNorm1d affine params: PyTorch defaults (weight=1, bias=0).
    gamma = jnp.ones((HIDDEN_DIM,), jnp.float32)
    beta = jnp.zeros((HIDDEN_DIM,), jnp.float32)

    lim2 = 1.0 / (HIDDEN_DIM ** 0.5)
    w2 = jax.random.uniform(kw2, (HIDDEN_DIM, OUT_DIM), jnp.float32, -lim2, lim2)
    b2 = jax.random.uniform(kb2, (OUT_DIM,), jnp.float32, -lim2, lim2)

    # One-time parameter prep (packing / padding hoisted out of the forward path).
    params = prepare_discriminator1_params(w1, b1, gamma, beta, w2, b2)

    # Pure-JAX f32 reference with PyTorch training-mode BN semantics.
    h_ref = jnp.maximum(x @ w1 + b1, 0.0)
    mu = jnp.mean(h_ref, axis=0, keepdims=True)
    var = jnp.mean((h_ref - mu) ** 2, axis=0, keepdims=True)
    h_ref = (h_ref - mu) / jnp.sqrt(var + BN_EPS) * gamma + beta
    ref = h_ref @ w2 + b2

    # 1) Default path (f32 MXU operands at these tiny shapes): tight semantic check.
    out_f32 = discriminator1_apply(x, params, n_out=OUT_DIM)
    jax.block_until_ready(out_f32)
    assert out_f32.shape == (BATCH, OUT_DIM)
    assert jnp.allclose(out_f32, ref, atol=1e-4, rtol=1e-4)

    # 2) Optional bf16-operand path (for large D/H): loose check — the only deviation
    #    from the f32 reference is the deliberate bf16 quantization of matmul operands.
    out_bf16 = discriminator1_apply(x, params, n_out=OUT_DIM, matmul_dtype=jnp.bfloat16)
    jax.block_until_ready(out_bf16)
    assert out_bf16.shape == (BATCH, OUT_DIM)
    assert jnp.allclose(out_bf16, ref, atol=1e-1, rtol=1e-1)

    print("KERNEL_OK")
</pallas_src>

<mosaic_0001>
module attributes {stable_mosaic.version = 11 : i64} {
  func.func @_discriminator1_kernel(%arg0: memref<8x32xf32, #tpu.memory_space<vmem>>, %arg1: memref<32x32xf32, #tpu.memory_space<vmem>>, %arg2: memref<8x32xf32, #tpu.memory_space<vmem>>, %arg3: memref<40x128xf32, #tpu.memory_space<vmem>>, %arg4: memref<8x128xf32, #tpu.memory_space<vmem>>) attributes {dimension_semantics = [], scalar_prefetch = 0 : i64, scratch_operands = 0 : i64, tpu.core_type = #tpu.core_type<tc>} {
    %c0 = arith.constant 0 : index
    %c0_0 = arith.constant 0 : index
    %0 = vector.load %arg2[%c0, %c0_0] : memref<8x32xf32, #tpu.memory_space<vmem>>, vector<1x32xf32>
    %c1 = arith.constant 1 : index
    %c0_1 = arith.constant 0 : index
    %1 = vector.load %arg2[%c1, %c0_1] : memref<8x32xf32, #tpu.memory_space<vmem>>, vector<1x32xf32>
    %c2 = arith.constant 2 : index
    %c0_2 = arith.constant 0 : index
    %2 = vector.load %arg2[%c2, %c0_2] : memref<8x32xf32, #tpu.memory_space<vmem>>, vector<1x32xf32>
    %c0_3 = arith.constant 0 : index
    %c0_4 = arith.constant 0 : index
    %3 = vector.load %arg3[%c0_3, %c0_4] : memref<40x128xf32, #tpu.memory_space<vmem>>, vector<32x128xf32>
    %c32 = arith.constant 32 : index
    %c0_5 = arith.constant 0 : index
    %4 = vector.load %arg3[%c32, %c0_5] : memref<40x128xf32, #tpu.memory_space<vmem>>, vector<1x128xf32>
    %c0_6 = arith.constant 0 : index
    %c0_7 = arith.constant 0 : index
    %5 = vector.load %arg0[%c0_6, %c0_7] : memref<8x32xf32, #tpu.memory_space<vmem>>, vector<8x32xf32>
    %c0_8 = arith.constant 0 : index
    %c0_9 = arith.constant 0 : index
    %6 = vector.load %arg1[%c0_8, %c0_9] : memref<32x32xf32, #tpu.memory_space<vmem>>, vector<32x32xf32>
    %cst = arith.constant dense<0.000000e+00> : vector<8x32xf32>
    %7 = tpu.matmul %5, %6, %cst {dimension_numbers = #tpu.dot_dimension_numbers<[1], [0], [0], [1], [0, 0, 1, 1], [], []>} : vector<8x32xf32>, vector<32x32xf32>, vector<8x32xf32> -> vector<8x32xf32>
    %8 = vector.broadcast %0 : vector<1x32xf32> to vector<8x32xf32>
    %9 = arith.addf %7, %8 : vector<8x32xf32>
    %cst_10 = arith.constant 0.000000e+00 : f32
    %10 = vector.broadcast %cst_10 : f32 to vector<8x32xf32>
    %11 = arith.maximumf %9, %10 : vector<8x32xf32>
    %12 = arith.mulf %11, %11 : vector<8x32xf32>
    %13 = tpu.concatenate %11, %12 in 1 : vector<8x32xf32>, vector<8x32xf32> -> vector<8x64xf32>
    %cst_11 = arith.constant dense<0.000000e+00> : vector<64xf32>
    %14 = vector.multi_reduction <add>, %13, %cst_11 [0] : vector<8x64xf32> to vector<64xf32>
    %15 = vector.shape_cast %14 : vector<64xf32> to vector<1x64xf32>
    %cst_12 = arith.constant 1.250000e-01 : f32
    %16 = vector.broadcast %cst_12 : f32 to vector<1x64xf32>
    %17 = arith.mulf %15, %16 : vector<1x64xf32>
    %18 = vector.extract_strided_slice %17 {offsets = [0, 0], sizes = [1, 32], strides = [1, 1]} : vector<1x64xf32> to vector<1x32xf32>
    %19 = vector.extract_strided_slice %17 {offsets = [0, 32], sizes = [1, 32], strides = [1, 1]} : vector<1x64xf32> to vector<1x32xf32>
    %20 = arith.mulf %18, %18 : vector<1x32xf32>
    %21 = arith.subf %19, %20 : vector<1x32xf32>
    %cst_13 = arith.constant 0.000000e+00 : f32
    %22 = vector.broadcast %cst_13 : f32 to vector<1x32xf32>
    %23 = arith.maximumf %21, %22 : vector<1x32xf32>
    %cst_14 = arith.constant 9.99999974E-6 : f32
    %24 = vector.broadcast %cst_14 : f32 to vector<1x32xf32>
    %25 = arith.addf %23, %24 : vector<1x32xf32>
    %26 = math.rsqrt %25 : vector<1x32xf32>
    %27 = arith.mulf %1, %26 : vector<1x32xf32>
    %28 = arith.mulf %18, %27 : vector<1x32xf32>
    %29 = arith.subf %2, %28 : vector<1x32xf32>
    %30 = vector.broadcast %27 : vector<1x32xf32> to vector<8x32xf32>
    %31 = arith.mulf %11, %30 : vector<8x32xf32>
    %32 = vector.broadcast %29 : vector<1x32xf32> to vector<8x32xf32>
    %33 = arith.addf %31, %32 : vector<8x32xf32>
    %cst_15 = arith.constant dense<0.000000e+00> : vector<8x128xf32>
    %34 = tpu.matmul %33, %3, %cst_15 {dimension_numbers = #tpu.dot_dimension_numbers<[1], [0], [0], [1], [0, 0, 1, 1], [], []>} : vector<8x32xf32>, vector<32x128xf32>, vector<8x128xf32> -> vector<8x128xf32>
    %35 = vector.broadcast %4 : vector<1x128xf32> to vector<8x128xf32>
    %36 = arith.addf %34, %35 : vector<8x128xf32>
    %c0_16 = arith.constant 0 : index
    %c0_17 = arith.constant 0 : index
    %37 = vector.load %arg4[%c0_16, %c0_17] : memref<8x128xf32, #tpu.memory_space<vmem>>, vector<8x128xf32>
    tpu.vector_store %arg4[%c0_16, %c0_17], %36 {strides = array<i32>} : memref<8x128xf32, #tpu.memory_space<vmem>>, vector<8x128xf32>,
    return
  }
}

</mosaic_0001>

<llo_original>
// kernel: discriminator1_apply.1
$region0: #{discriminator1_apply.1}
  #allocation0 [shape = 'u32[]', space=smem, size = 0x4, offset = 0x4, fixed_abs, tag = 'smem constant byte address 0x4 - core index']
  #allocation1 [shape = 'u32[72,128]{1,0:T(1,128)}', space=vmem, size = 0x9000, scoped, tag = 'internal scratch']
  %s0 = inlined_call_operand.hbm [shape: f32[8,32], index: 0, kind: input, shape index: {}]
  %s1 = inlined_call_operand.hbm [shape: f32[32,32], index: 1, kind: input, shape index: {}]
  %s2 = inlined_call_operand.hbm [shape: f32[8,32], index: 2, kind: input, shape index: {}]
  %s3 = inlined_call_operand.hbm [shape: f32[40,128], index: 3, kind: input, shape index: {}]
  %s4 = inlined_call_operand.vmem [shape: f32[8,128], index: 4, kind: output, shape index: {}]
  %s5 = sld [smem:[#allocation0]]
  $region42: #{discriminator1_apply.1} parent=0
    _
  %s7 = ssub.s32 1, %s5
  %s8 = scalar_select 0, %s7, %s5
  $region1: #{discriminator1_apply.1} parent=0
    #allocation2 [shape = 'u8[4096]{0}', space=vmem, size = 0x1000, scoped, tag = 'input window, operand 0, single buffered']
    #allocation3 [shape = 's32[1]{0}', space=sflag, size = 0x4, scoped, tag = 'scoped memory for discriminator1_apply.1']
    #allocation4 [shape = 'u8[16384]{0}', space=vmem, size = 0x4000, scoped, tag = 'input window, operand 1, single buffered']
    #allocation5 [shape = 's32[1]{0}', space=sflag, size = 0x4, scoped, tag = 'scoped memory for discriminator1_apply.1']
    #allocation6 [shape = 'u8[4096]{0}', space=vmem, size = 0x1000, scoped, tag = 'input window, operand 2, single buffered']
    #allocation7 [shape = 'u8[20480]{0}', space=vmem, size = 0x5000, scoped, tag = 'input window, operand 3, single buffered']
    #allocation8 [shape = 's32[1]{0}', space=sflag, size = 0x4, scoped, tag = 'scoped memory for discriminator1_apply.1']
    %9 = vsyncpa [#allocation3], 0
    %10 = vsyncpa [#allocation5], 0
    %11 = vsyncpa [#allocation8], 0
    // Predicated region
    $region2: #{discriminator1_apply.1} parent=1 // pred_check
      _
    $region3: #{discriminator1_apply.1} parent=1 // pred_check_branch
      %13 = sbr.rel (0) target = $region5
    $region4: #{discriminator1_apply.1} parent=1 // pred_region
      %15 = vsyncadd [#allocation3], 0
      %s17 = sshll.u32 %s0, 4
      %s18 = int_to_ptr.hbm [resolvable:$true] %s17
      %s19 = sshll.u32 [#allocation2], 4
      %s20 = int_to_ptr.vmem [resolvable:$true] %s19
      %22 = dma.hbm_to_vmem [thread:$0]  %s18, 128, %s20, [#allocation3]
    $region5: #{discriminator1_apply.1} parent=1 // pred_fallthru
      _
    // Predicated region
    $region6: #{discriminator1_apply.1} parent=1 // pred_check
      _
    $region7: #{discriminator1_apply.1} parent=1 // pred_check_branch
      %24 = sbr.rel (0) target = $region9
    $region8: #{discriminator1_apply.1} parent=1 // pred_region
      %26 = vsyncadd [#allocation5], 0
      %s27 = sshll.u32 %s1, 4
      %s28 = int_to_ptr.hbm [resolvable:$true] %s27
      %s29 = sshll.u32 [#allocation4], 4
      %s30 = int_to_ptr.vmem [resolvable:$true] %s29
      %35 = dma.hbm_to_vmem [thread:$0]  %s28, 512, %s30, [#allocation5], 128, 128, 8
    $region9: #{discriminator1_apply.1} parent=1 // pred_fallthru
      _
    // Predicated region
    $region10: #{discriminator1_apply.1} parent=1 // pred_check
      _
    $region11: #{discriminator1_apply.1} parent=1 // pred_check_branch
      %37 = sbr.rel (0) target = $region13
    $region12: #{discriminator1_apply.1} parent=1 // pred_region
      %39 = vsyncadd [#allocation5], 0
      %s41 = sshll.u32 %s2, 4
      %s42 = int_to_ptr.hbm [resolvable:$true] %s41
      %s43 = sshll.u32 [#allocation6], 4
      %s44 = int_to_ptr.vmem [resolvable:$true] %s43
      %46 = dma.hbm_to_vmem [thread:$0]  %s42, 128, %s44, [#allocation5]
    $region13: #{discriminator1_apply.1} parent=1 // pred_fallthru
      _
    // Predicated region
    $region14: #{discriminator1_apply.1} parent=1 // pred_check
      _
    $region15: #{discriminator1_apply.1} parent=1 // pred_check_branch
      %48 = sbr.rel (0) target = $region17
    $region16: #{discriminator1_apply.1} parent=1 // pred_region
      %50 = vsyncadd [#allocation8], 0
      %s51 = sshll.u32 %s3, 4
      %s52 = int_to_ptr.hbm [resolvable:$true] %s51
      %s53 = sshll.u32 [#allocation7], 4
      %s54 = int_to_ptr.vmem [resolvable:$true] %s53
      %59 = dma.hbm_to_vmem [thread:$0]  %s52, 640, %s54, [#allocation8], 128, 128, 8
    $region17: #{discriminator1_apply.1} parent=1 // pred_fallthru
      _
    // Predicated region
    $region18: #{discriminator1_apply.1} parent=1 // pred_check
      _
    $region19: #{discriminator1_apply.1} parent=1 // pred_check_branch
      %61 = sbr.rel (0) target = $region21
    $region20: #{discriminator1_apply.1} parent=1 // pred_region
      %63 = dma.done [#allocation3], 128
    $region21: #{discriminator1_apply.1} parent=1 // pred_fallthru
      _
    // Predicated region
    $region22: #{discriminator1_apply.1} parent=1 // pred_check
      _
    $region23: #{discriminator1_apply.1} parent=1 // pred_check_branch
      %65 = sbr.rel (0) target = $region25
    $region24: #{discriminator1_apply.1} parent=1 // pred_region
      %67 = dma.done [#allocation5], 512
    $region25: #{discriminator1_apply.1} parent=1 // pred_fallthru
      _
    // Predicated region
    $region26: #{discriminator1_apply.1} parent=1 // pred_check
      _
    $region27: #{discriminator1_apply.1} parent=1 // pred_check_branch
      %69 = sbr.rel (0) target = $region29
    $region28: #{discriminator1_apply.1} parent=1 // pred_region
      %71 = dma.done [#allocation5], 128
    $region29: #{discriminator1_apply.1} parent=1 // pred_fallthru
      _
    // Predicated region
    $region30: #{discriminator1_apply.1} parent=1 // pred_check
      _
    $region31: #{discriminator1_apply.1} parent=1 // pred_check_branch
      %73 = sbr.rel (0) target = $region33
    $region32: #{discriminator1_apply.1} parent=1 // pred_region
      %75 = dma.done [#allocation8], 640
    $region33: #{discriminator1_apply.1} parent=1 // pred_fallthru
      _
    %v76 = vld [vmem:[#allocation6] sm:$0x1]
    %v77 = vld [vmem:[#allocation6 + $0x1] sm:$0x1]
    %v78 = vld [vmem:[#allocation6 + $0x2] sm:$0x1]
    %v79 = vld [vmem:[#allocation7] sm:$0xff]
    %v80 = vld [vmem:[#allocation7 + $0x8] sm:$0xff]
    %v81 = vld [vmem:[#allocation7 + $0x10] sm:$0xff]
    %v82 = vld [vmem:[#allocation7 + $0x18] sm:$0xff]
    %v83 = vld [vmem:[#allocation7 + $0x20] sm:$0x1]
    %v84 = vld [vmem:[#allocation2] sm:$0xff]
    %v85 = vld [vmem:[#allocation4] sm:$0xff]
    %v86 = vld [vmem:[#allocation4 + $0x8] sm:$0xff]
    %v87 = vld [vmem:[#allocation4 + $0x10] sm:$0xff]
    %v88 = vld [vmem:[#allocation4 + $0x18] sm:$0xff]
    %v89 = vperm.slane %v76, 0
    %vm90 = vcmask 261120
    %v92 = vsel %vm90, %v84, 0
    %94 = vmatpush.msra.mxu0 0.0
    %95 = vmatpush.msra.mxu0 0.0
    %96 = vmatpush.msra.mxu0 0.0
    %97 = vmatpush.msra.mxu0 0.0
    %98 = vmatpush.msra.mxu0 0.0
    %99 = vmatpush.msra.mxu0 0.0
    %100 = vmatpush.msra.mxu0 0.0
    %101 = vmatpush.msra.mxu0 0.0
    %102 = vmatpush.msra.mxu0 0.0
    %103 = vmatpush.msra.mxu0 0.0
    %104 = vmatpush.msra.mxu0 0.0
    %105 = vmatpush.msra.mxu0 0.0
    %106 = vmatpush.msra.mxu0 %v88
    %107 = vmatpush.msra.mxu0 %v87
    %108 = vmatpush.msra.mxu0 %v86
    %109 = vmatpush.msra.mxu0 %v85
    %110 = vmatmul.f32.gmra.mxu0 %v92
    %v111 = vpop.f32.mrf.mxu0
    %v112 = vadd.f32 %v89, %v111
    %113 = vdwg.mxu0
    %v114 = vmax.f32 %v112, 0.0
    %v115 = vmul.f32 %v114, %v114
    %117 = vrot.lane.b32.xlu0 %v115, 32
    %v118 = vpop.permute.xlu0 %117
    %v120 = vsel %vm90, %v114, %v118
    %vm121 = vcmask 523264
    %v122 = vsel %vm121, %v120, 0.0
    %v123 = vrot.slane %v122, 4
    %v124 = vadd.f32 %v122, %v123
    %v125 = vrot.slane %v124, 2
    %v126 = vadd.f32 %v124, %v125
    %v127 = vrot.slane %v126, 1
    %v128 = vadd.f32 %v126, %v127
    %v129 = vmul.f32 %v128, 0.125
    %v130 = vmul.f32 %v129, %v129
    %132 = vrot.lane.b32.xlu0 %v130, 32
    %v133 = vpop.permute.xlu0 %132
    %v135 = vsub.f32 %v129, %v133
    %v136 = vmax.f32 %v135, 0.0
    %v137 = vadd.f32 %v136, 1e-05
    %v138 = vrsqrt.pop %v137
    %v139 = vmul.f32 %v138, %v137
    %v140 = vmul.f32 %v139, %v138
    %v141 = vmul.f32 0.5, %v140
    %v142 = vsub.f32 1.5, %v141
    %v143 = vmul.f32 %v138, %v142
    %vm144 = vweird.f32 %v137
    %vm145 = vweird.f32 %v138
    %vm146 = vmor %vm144, %vm145
    %v147 = vsel %vm146, %v138, %v143
    %149 = vrot.lane.b32.xlu0 %v147, 96
    %v150 = vpop.permute.xlu0 %149
    %v152 = vmul.f32 %v77, %v150
    %v153 = vmul.f32 %v129, %v152
    %v154 = vsub.f32 %v78, %v153
    %v155 = vperm.slane %v152, 0
    %v156 = vmul.f32 %v114, %v155
    %v157 = vperm.slane %v154, 0
    %v158 = vadd.f32 %v156, %v157
    %v159 = vperm.slane %v83, 0
    %v161 = vsel %vm90, %v158, 0
    %163 = vmatpush.msra.mxu0 0.0
    %164 = vmatpush.msra.mxu0 0.0
    %165 = vmatpush.msra.mxu0 0.0
    %166 = vmatpush.msra.mxu0 0.0
    %167 = vmatpush.msra.mxu0 0.0
    %168 = vmatpush.msra.mxu0 0.0
    %169 = vmatpush.msra.mxu0 0.0
    %170 = vmatpush.msra.mxu0 0.0
    %171 = vmatpush.msra.mxu0 0.0
    %172 = vmatpush.msra.mxu0 0.0
    %173 = vmatpush.msra.mxu0 0.0
    %174 = vmatpush.msra.mxu0 0.0
    %175 = vmatpush.msra.mxu0 %v82
    %176 = vmatpush.msra.mxu0 %v81
    %177 = vmatpush.msra.mxu0 %v80
    %178 = vmatpush.msra.mxu0 %v79
    %179 = vmatmul.f32.gmra.mxu0 %v161
    %v180 = vpop.f32.mrf.mxu0
    %v181 = vadd.f32 %v159, %v180
    %182 = vdwg.mxu0
    %183 = vst [vmem:[%s4] sm:$0xff] %v181
    // Predicated region
    $region34: #{discriminator1_apply.1} parent=1 // pred_check
      _
    $region35: #{discriminator1_apply.1} parent=1 // pred_check_branch
      %185 = sbr.rel (0) target = $region37
    $region36: #{discriminator1_apply.1} parent=1 // pred_region
      _
    $region37: #{discriminator1_apply.1} parent=1 // pred_fallthru
      _
    // Predicated region
    $region38: #{discriminator1_apply.1} parent=1 // pred_check
      _
    $region39: #{discriminator1_apply.1} parent=1 // pred_check_branch
      %187 = sbr.rel (0) target = $region41
    $region40: #{discriminator1_apply.1} parent=1 // pred_region
      _
    $region41: #{discriminator1_apply.1} parent=1 // pred_fallthru
      _
    %188 = vsyncpa [#allocation3], 1
    %189 = vsyncpa [#allocation5], 1
    %190 = vsyncpa [#allocation8], 1

</llo_original>
